<compile_context>
chip_gen: v7x
topology: tpu7x:2x2x1
jax: 0.10.0
libtpu: 0.0.40
codegen_flags: <defaults>
</compile_context>

<pallas_src>
import functools

import jax
import jax.numpy as jnp
from jax.experimental import pallas as pl
from jax.experimental.pallas import tpu as pltpu

_LANES = 128


def _rgb2hsv_kernel(x_ref, o_ref, *, epsilon, hmax):
    # x_ref, o_ref: (3, rows_tile, 128) VMEM tiles (batch dim squeezed).
    sixth = hmax / 6.0

    r = x_ref[0]
    g = x_ref[1]
    b = x_ref[2]

    max_rgb = jnp.maximum(jnp.maximum(r, g), b)          # x.max(-3).values
    min_rgb = jnp.minimum(jnp.minimum(r, g), b)          # x.min(-3).values
    max_min = max_rgb - min_rgb + epsilon

    # EUP approx reciprocal + one Newton-Raphson step: rel err ~2^-24, well
    # within the 1e-5 tolerance, and keeps the divide off the VALU slots.
    inv_mm = pl.reciprocal(max_min, approx=True)
    inv_mm = inv_mm * (2.0 - max_min * inv_mm)

    k = sixth * inv_mm
    h1 = (g - r) * k + sixth
    h2 = (b - g) * k + 3.0 * sixth
    h3 = (r - b) * k + 5.0 * sixth

    # argmin over channels with first-occurrence tie-breaking (torch.min):
    #   argmin == 0 (r is min) -> h2
    #   argmin == 1 (g is min) -> h3
    #   argmin == 2 (b is min) -> h1
    r_is_min = jnp.logical_and(r <= g, r <= b)
    g_is_min = jnp.logical_and(g < r, g <= b)
    h = jnp.where(r_is_min, h2, jnp.where(g_is_min, h3, h1))

    denom = max_rgb + epsilon
    inv_d = pl.reciprocal(denom, approx=True)
    inv_d = inv_d * (2.0 - denom * inv_d)
    s = max_min * inv_d
    v = max_rgb

    o_ref[0] = h
    o_ref[1] = s
    o_ref[2] = v


def _pick_rows_tile(rows, n_batch, cap=512, min_steps=4):
    """Rows per block: large (256 KiB contiguous DMA per channel) but with
    enough total grid steps to split across v7x's 2 TensorCores.

    cap=512 keeps each (3, rows_tile, 128) f32 block at <= 768 KiB, so the
    double-buffered in+out working set (~3 MiB) fits comfortably under the
    32 MiB scoped VMEM limit on every generation (v5e/v6e/v7x).
    """
    tile = min(cap, rows)
    if tile < rows:
        # Non-full blocks must have the second-to-last dim a multiple of 8.
        tile = max(8, (tile // 8) * 8)
    # Ensure a few grid steps overall so "parallel" axes actually shard on v7x.
    while tile > 8 and n_batch * pl.cdiv(rows, tile) < min_steps:
        tile = max(8, ((tile // 2 + 7) // 8) * 8)
    return tile


def rgb2hsv(x, *, epsilon=1e-10, hmax=1.0):
    """x: (N, 3, H, W) float32 -> (N, 3, H, W) HSV."""
    N, C, H, W = x.shape
    assert C == 3
    P = H * W

    # Lane-dense layout: flatten pixels, pad to a multiple of 128 lanes.
    P_pad = pl.cdiv(P, _LANES) * _LANES
    xp = x.reshape(N, 3, P)
    if P_pad != P:
        xp = jnp.pad(xp, ((0, 0), (0, 0), (0, P_pad - P)))
    rows = P_pad // _LANES
    xv = xp.reshape(N, 3, rows, _LANES)

    rows_tile = _pick_rows_tile(rows, N)
    grid = (N, pl.cdiv(rows, rows_tile))
    block = (None, 3, rows_tile, _LANES)
    index_map = lambda n, p: (n, 0, p, 0)

    kernel = functools.partial(_rgb2hsv_kernel, epsilon=epsilon, hmax=hmax)
    out = pl.pallas_call(
        kernel,
        out_shape=jax.ShapeDtypeStruct((N, 3, rows, _LANES), x.dtype),
        grid_spec=pl.GridSpec(
            grid=grid,
            in_specs=[pl.BlockSpec(block, index_map)],
            out_specs=pl.BlockSpec(block, index_map),
        ),
        compiler_params=pltpu.CompilerParams(
            # Pure elementwise op: both grid axes independent -> megacore.
            dimension_semantics=("parallel", "parallel"),
            # Blocks are <= 768 KiB each; 32 MiB is plenty and within v7x's
            # 64 MiB physical VMEM (and explicit so v5e's 16 MiB default
            # never silently reduces pipeline depth).
            vmem_limit_bytes=32 << 20,
        ),
    )(xv)

    out = out.reshape(N, 3, P_pad)
    if P_pad != P:
        out = out[:, :, :P]
    return out.reshape(N, 3, H, W)


def _rgb2hsv_ref(x, *, epsilon=1e-10, hmax=1.0):
    # Pure-JAX reference mirroring the PyTorch forward exactly.
    sixth = hmax / 6.0
    r, g, b = x[..., 0, :, :], x[..., 1, :, :], x[..., 2, :, :]
    max_rgb = jnp.max(x, axis=-3)
    min_rgb = jnp.min(x, axis=-3)
    argmin_rgb = jnp.argmin(x, axis=-3)
    max_min = max_rgb - min_rgb + epsilon
    h1 = sixth * (g - r) / max_min + sixth
    h2 = sixth * (b - g) / max_min + 3 * sixth
    h3 = sixth * (r - b) / max_min + 5 * sixth
    h_stack = jnp.stack((h2, h3, h1), axis=0)
    h = jnp.take_along_axis(h_stack, argmin_rgb[None], axis=0)[0]
    s = max_min / (max_rgb + epsilon)
    v = max_rgb
    return jnp.stack((h, s, v), axis=-3)


if __name__ == "__main__":
    key = jax.random.PRNGKey(0)
    k1, k2, k3 = jax.random.split(key, 3)

    # Primary test: input_dims = (3, 16, 16), batch 2 (lane-dense path).
    x = jax.random.uniform(k1, (2, 3, 16, 16), dtype=jnp.float32)
    # Constant patch to exercise the max==min / argmin tie-breaking path.
    x = x.at[0, :, :4, :4].set(0.5)
    out = jax.block_until_ready(rgb2hsv(x))
    ref = _rgb2hsv_ref(x)
    assert out.shape == (2, 3, 16, 16)
    assert jnp.allclose(out, ref, atol=1e-5, rtol=1e-5)

    # Secondary test: H*W not a multiple of 128 -> pad-and-slice path.
    x2 = jax.random.uniform(k2, (2, 3, 20, 20), dtype=jnp.float32)
    out2 = jax.block_until_ready(rgb2hsv(x2))
    ref2 = _rgb2hsv_ref(x2)
    assert jnp.allclose(out2, ref2, atol=1e-5, rtol=1e-5)

    # Third test: row count not a multiple of rows_tile -> masked edge block.
    x3 = jax.random.uniform(k3, (1, 3, 128, 516), dtype=jnp.float32)
    out3 = jax.block_until_ready(rgb2hsv(x3))
    ref3 = _rgb2hsv_ref(x3)
    assert jnp.allclose(out3, ref3, atol=1e-5, rtol=1e-5)

    print("KERNEL_OK")
</pallas_src>

<mosaic_0001>
module attributes {stable_mosaic.version = 11 : i64} {
  func.func @_rgb2hsv_kernel(%arg0: i32, %arg1: i32, %arg2: memref<1x3x2x128xf32, #tpu.memory_space<vmem>>, %arg3: memref<1x3x2x128xf32, #tpu.memory_space<vmem>>) attributes {dimension_semantics = [#tpu.dimension_semantics<parallel>, #tpu.dimension_semantics<parallel>], iteration_bounds = array<i64: 2, 1>, scalar_prefetch = 0 : i64, scratch_operands = 0 : i64, tpu.core_type = #tpu.core_type<tc>, window_params = [{transform_indices = @transform_0, window_bounds = array<i64: 1, 3, 2, 128>}, {transform_indices = @transform_1, window_bounds = array<i64: 1, 3, 2, 128>}]} {
    %c0 = arith.constant 0 : index
    %c0_0 = arith.constant 0 : index
    %c0_1 = arith.constant 0 : index
    %c0_2 = arith.constant 0 : index
    %0 = vector.load %arg2[%c0, %c0_0, %c0_1, %c0_2] : memref<1x3x2x128xf32, #tpu.memory_space<vmem>>, vector<1x1x2x128xf32>
    %1 = vector.shape_cast %0 : vector<1x1x2x128xf32> to vector<2x128xf32>
    %c0_3 = arith.constant 0 : index
    %c1 = arith.constant 1 : index
    %c0_4 = arith.constant 0 : index
    %c0_5 = arith.constant 0 : index
    %2 = vector.load %arg2[%c0_3, %c1, %c0_4, %c0_5] : memref<1x3x2x128xf32, #tpu.memory_space<vmem>>, vector<1x1x2x128xf32>
    %3 = vector.shape_cast %2 : vector<1x1x2x128xf32> to vector<2x128xf32>
    %c0_6 = arith.constant 0 : index
    %c2 = arith.constant 2 : index
    %c0_7 = arith.constant 0 : index
    %c0_8 = arith.constant 0 : index
    %4 = vector.load %arg2[%c0_6, %c2, %c0_7, %c0_8] : memref<1x3x2x128xf32, #tpu.memory_space<vmem>>, vector<1x1x2x128xf32>
    %5 = vector.shape_cast %4 : vector<1x1x2x128xf32> to vector<2x128xf32>
    %6 = arith.maximumf %1, %3 : vector<2x128xf32>
    %7 = arith.maximumf %6, %5 : vector<2x128xf32>
    %8 = arith.minimumf %1, %3 : vector<2x128xf32>
    %9 = arith.minimumf %8, %5 : vector<2x128xf32>
    %10 = arith.subf %7, %9 : vector<2x128xf32>
    %cst = arith.constant 1.000000e-10 : f32
    %11 = vector.broadcast %cst : f32 to vector<2x128xf32>
    %12 = arith.addf %10, %11 : vector<2x128xf32>
    %13 = tpu.reciprocal %12 {approx = true} : vector<2x128xf32> -> vector<2x128xf32>
    %14 = arith.mulf %12, %13 : vector<2x128xf32>
    %cst_9 = arith.constant 2.000000e+00 : f32
    %15 = vector.broadcast %cst_9 : f32 to vector<2x128xf32>
    %16 = arith.subf %15, %14 : vector<2x128xf32>
    %17 = arith.mulf %13, %16 : vector<2x128xf32>
    %cst_10 = arith.constant 0.166666672 : f32
    %18 = vector.broadcast %cst_10 : f32 to vector<2x128xf32>
    %19 = arith.mulf %18, %17 : vector<2x128xf32>
    %20 = arith.subf %3, %1 : vector<2x128xf32>
    %21 = arith.mulf %20, %19 : vector<2x128xf32>
    %cst_11 = arith.constant 0.166666672 : f32
    %22 = vector.broadcast %cst_11 : f32 to vector<2x128xf32>
    %23 = arith.addf %21, %22 : vector<2x128xf32>
    %24 = arith.subf %5, %3 : vector<2x128xf32>
    %25 = arith.mulf %24, %19 : vector<2x128xf32>
    %cst_12 = arith.constant 5.000000e-01 : f32
    %26 = vector.broadcast %cst_12 : f32 to vector<2x128xf32>
    %27 = arith.addf %25, %26 : vector<2x128xf32>
    %28 = arith.subf %1, %5 : vector<2x128xf32>
    %29 = arith.mulf %28, %19 : vector<2x128xf32>
    %cst_13 = arith.constant 0.833333313 : f32
    %30 = vector.broadcast %cst_13 : f32 to vector<2x128xf32>
    %31 = arith.addf %29, %30 : vector<2x128xf32>
    %32 = arith.cmpf ole, %1, %3 : vector<2x128xf32>
    %33 = arith.cmpf ole, %1, %5 : vector<2x128xf32>
    %34 = arith.andi %32, %33 : vector<2x128xi1>
    %35 = arith.cmpf olt, %3, %1 : vector<2x128xf32>
    %36 = arith.cmpf ole, %3, %5 : vector<2x128xf32>
    %37 = arith.andi %35, %36 : vector<2x128xi1>
    %38 = arith.select %37, %31, %23 : vector<2x128xi1>, vector<2x128xf32>
    %39 = arith.select %34, %27, %38 : vector<2x128xi1>, vector<2x128xf32>
    %cst_14 = arith.constant 1.000000e-10 : f32
    %40 = vector.broadcast %cst_14 : f32 to vector<2x128xf32>
    %41 = arith.addf %7, %40 : vector<2x128xf32>
    %42 = tpu.reciprocal %41 {approx = true} : vector<2x128xf32> -> vector<2x128xf32>
    %43 = arith.mulf %41, %42 : vector<2x128xf32>
    %cst_15 = arith.constant 2.000000e+00 : f32
    %44 = vector.broadcast %cst_15 : f32 to vector<2x128xf32>
    %45 = arith.subf %44, %43 : vector<2x128xf32>
    %46 = arith.mulf %42, %45 : vector<2x128xf32>
    %47 = arith.mulf %12, %46 : vector<2x128xf32>
    %c0_16 = arith.constant 0 : index
    %c0_17 = arith.constant 0 : index
    %c0_18 = arith.constant 0 : index
    %c0_19 = arith.constant 0 : index
    %48 = vector.load %arg3[%c0_16, %c0_17, %c0_18, %c0_19] : memref<1x3x2x128xf32, #tpu.memory_space<vmem>>, vector<1x1x2x128xf32>
    %49 = vector.shape_cast %48 : vector<1x1x2x128xf32> to vector<2x128xf32>
    %50 = vector.shape_cast %39 : vector<2x128xf32> to vector<1x1x2x128xf32>
    tpu.vector_store %arg3[%c0_16, %c0_17, %c0_18, %c0_19], %50 {strides = array<i32>} : memref<1x3x2x128xf32, #tpu.memory_space<vmem>>, vector<1x1x2x128xf32>,
    %c0_20 = arith.constant 0 : index
    %c1_21 = arith.constant 1 : index
    %c0_22 = arith.constant 0 : index
    %c0_23 = arith.constant 0 : index
    %51 = vector.load %arg3[%c0_20, %c1_21, %c0_22, %c0_23] : memref<1x3x2x128xf32, #tpu.memory_space<vmem>>, vector<1x1x2x128xf32>
    %52 = vector.shape_cast %51 : vector<1x1x2x128xf32> to vector<2x128xf32>
    %53 = vector.shape_cast %47 : vector<2x128xf32> to vector<1x1x2x128xf32>
    tpu.vector_store %arg3[%c0_20, %c1_21, %c0_22, %c0_23], %53 {strides = array<i32>} : memref<1x3x2x128xf32, #tpu.memory_space<vmem>>, vector<1x1x2x128xf32>,
    %c0_24 = arith.constant 0 : index
    %c2_25 = arith.constant 2 : index
    %c0_26 = arith.constant 0 : index
    %c0_27 = arith.constant 0 : index
    %54 = vector.load %arg3[%c0_24, %c2_25, %c0_26, %c0_27] : memref<1x3x2x128xf32, #tpu.memory_space<vmem>>, vector<1x1x2x128xf32>
    %55 = vector.shape_cast %54 : vector<1x1x2x128xf32> to vector<2x128xf32>
    %56 = vector.shape_cast %7 : vector<2x128xf32> to vector<1x1x2x128xf32>
    tpu.vector_store %arg3[%c0_24, %c2_25, %c0_26, %c0_27], %56 {strides = array<i32>} : memref<1x3x2x128xf32, #tpu.memory_space<vmem>>, vector<1x1x2x128xf32>,
    return
  }
  func.func @transform_0(%arg0: i32, %arg1: i32) -> (i32, i32, i32, i32) {
    %c0_i32 = arith.constant 0 : i32
    %c0_i32_0 = arith.constant 0 : i32
    %c0_i32_1 = arith.constant 0 : i32
    return %arg0, %c0_i32, %arg1, %c0_i32_0 : i32, i32, i32, i32
  }
  func.func @transform_1(%arg0: i32, %arg1: i32) -> (i32, i32, i32, i32) {
    %c0_i32 = arith.constant 0 : i32
    %c0_i32_0 = arith.constant 0 : i32
    %c0_i32_1 = arith.constant 0 : i32
    return %arg0, %c0_i32, %arg1, %c0_i32_0 : i32, i32, i32, i32
  }
}

</mosaic_0001>

<llo_original>
// kernel: tpu_custom_call.1
$region0: #{tpu_custom_call.1}
  #allocation0 [shape = 'u32[]', space=smem, size = 0x4, offset = 0x4, fixed_abs, tag = 'smem constant byte address 0x4 - core index']
  #allocation1 [shape = 'u32[144,128]{1,0:T(1,128)}', space=vmem, size = 0x12000, scoped, tag = 'internal scratch']
  %s0 = inlined_call_operand.hbm [shape: f32[2,3,2,128], index: 0, kind: input, shape index: {}]
  %s1 = inlined_call_operand.hbm [shape: f32[2,3,2,128], index: 1, kind: output, shape index: {}]
  %s2 = sld [smem:[#allocation0]]
  $region41: #{tpu_custom_call.1} parent=0
    _
  %s4 = ssub.s32 1, %s2
  %s5 = scalar_select 0, %s4, %s2
  $region1: #{tpu_custom_call.1} parent=0
    #allocation2 [shape = 'u8[6144]{0}', space=vmem, size = 0x1800, scoped, tag = 'input window, operand 0']
    #allocation3 [shape = 's32[2]{0}', space=sflag, size = 0x8, scoped, tag = 'scoped memory for tpu_custom_call.1']
    #allocation4 [shape = 's32[2]{0}', space=sflag, size = 0x8, scoped, tag = 'scoped memory for tpu_custom_call.1']
    #allocation5 [shape = 'u8[6144]{0}', space=vmem, size = 0x1800, scoped, tag = 'output window, operand 0']
    %6 = vsyncpa [#allocation3], 0
    %s7 = scalar_lea.sflag [#allocation3], 1
    %8 = vsyncpa %s7, 0
    %9 = vsyncpa [#allocation4], 0
    %s10 = scalar_lea.sflag [#allocation4], 1
    %11 = vsyncpa %s10, 0
    loop: start=0, step=1, limit=4
    $region2: #{tpu_custom_call.1} parent=1 // loop_pre_header
      _
    $region3: #{tpu_custom_call.1} parent=1 // loop_header
      %s13 = sphi 0, %s17
      %p14 = scmp.ge.s32.totalorder %s13, 4
      %s20 = sphi 0, %s32
      %s21 = sphi 0, %s28
      %s22 = sphi 0, %s20
      %s23 = sphi 0, %s21
      %s24 = sphi 0, %s22
      %s25 = sphi 0, %s23
      %s37 = sphi 0, %s39
      %s40 = sphi 0, %s37
      %s41 = sphi 0, %s40
      %s57 = sphi 0, %s41
      %s65 = sphi 0, %s67
      %s68 = sphi 0, %s65
      %s69 = sphi 0, %s68
      %s85 = sphi 0, %s69
    $region4: #{tpu_custom_call.1} parent=1 // loop_header_branch
      %16 = sbr.rel (%p14) target = $region8
    $region5: #{tpu_custom_call.1} parent=1 // loop_body
      %s18 = ssub.s32 %s13, 1
      %s19 = ssub.s32 %s13, 2
      %s26 = sadd.s32 1, %s21
      %p27 = scmp.ge.s32.totalorder %s26, 1
      %s28 = scalar_select %p27, 0, %s26
      %s29 = sadd.s32 1, %s20
      %s30 = scalar_select %p27, %s29, %s20
      %p31 = scmp.ge.s32.totalorder %s30, 2
      %s32 = scalar_select %p31, 0, %s30
      %s33 = ssub.s32 %s20, %s32
      %s34 = ssub.s32 %s21, %s28
      %s35 = sor.u32 %s33, %s34
      %p36 = scmp.eq.s32.totalorder %s35, 0
      %s38 = sadd.s32 %s37, 1
      %s39 = scalar_select %p36, %s37, %s38
      %p42 = pneg %p36
      %p43 = scmp.eq.s32.totalorder %s13, 1
      %p44 = por %p42, %p43
      %p45 = scmp.ne.s32.totalorder %s37, %s40
      %p46 = scmp.eq.s32.totalorder %s13, 0
      %p47 = por %p45, %p46
      %p48 = scmp.ne.s32.totalorder %s37, %s40
      %p49 = scmp.eq.s32.totalorder %s18, 1
      %p50 = por %p48, %p49
      %p51 = scmp.ne.s32.totalorder %s40, %s41
      %p52 = scmp.eq.s32.totalorder %s18, 0
      %p53 = por %p51, %p52
      %p54 = scmp.ne.s32.totalorder %s40, %s41
      %p55 = scmp.eq.s32.totalorder %s19, 1
      %p56 = por %p54, %p55
      %p58 = scmp.ne.s32.totalorder %s41, %s57
      %p59 = scmp.eq.s32.totalorder %s19, 0
      %p60 = por %p58, %p59
      %s61 = ssub.s32 %s20, %s32
      %s62 = ssub.s32 %s21, %s28
      %s63 = sor.u32 %s61, %s62
      %p64 = scmp.eq.s32.totalorder %s63, 0
      %s66 = sadd.s32 %s65, 1
      %s67 = scalar_select %p64, %s65, %s66
      %p70 = pneg %p64
      %p71 = scmp.eq.s32.totalorder %s13, 1
      %p72 = por %p70, %p71
      %p73 = scmp.ne.s32.totalorder %s65, %s68
      %p74 = scmp.eq.s32.totalorder %s13, 0
      %p75 = por %p73, %p74
      %p76 = scmp.ne.s32.totalorder %s65, %s68
      %p77 = scmp.eq.s32.totalorder %s18, 1
      %p78 = por %p76, %p77
      %p79 = scmp.ne.s32.totalorder %s68, %s69
      %p80 = scmp.eq.s32.totalorder %s18, 0
      %p81 = por %p79, %p80
      %p82 = scmp.ne.s32.totalorder %s68, %s69
      %p83 = scmp.eq.s32.totalorder %s19, 1
      %p84 = por %p82, %p83
      %p86 = scmp.ne.s32.totalorder %s69, %s85
      %p87 = scmp.eq.s32.totalorder %s19, 0
      %p88 = por %p86, %p87
      %p89 = scmp.le.s32.totalorder 1, %s13
      %p90 = scmp.lt.s32.totalorder %s13, 3
      %p91 = pnand %p89, %p90
      %p92 = pneg %p91
      // Predicated region
      $region9: #{tpu_custom_call.1} parent=5 // pred_check
        _
      $region10: #{tpu_custom_call.1} parent=5 // pred_check_branch
        %94 = sbr.rel (%p91) target = $region12
      $region11: #{tpu_custom_call.1} parent=5 // pred_region
        %s95 = ssub.s32 %s13, 1
      $region12: #{tpu_custom_call.1} parent=5 // pred_fallthru
        _
      %p96 = scmp.lt.s32.totalorder %s13, 2
      // Predicated region
      $region13: #{tpu_custom_call.1} parent=5 // pred_check
        %p97 = pneg %p96
      $region14: #{tpu_custom_call.1} parent=5 // pred_check_branch
        %99 = sbr.rel (%p97) target = $region16
      $region15: #{tpu_custom_call.1} parent=5 // pred_region
        // Predicated region
        $region17: #{tpu_custom_call.1} parent=15 // pred_check
          %p100 = pneg %p47
        $region18: #{tpu_custom_call.1} parent=15 // pred_check_branch
          %102 = sbr.rel (%p100) target = $region20
        $region19: #{tpu_custom_call.1} parent=15 // pred_region
          %s103 = sand.u32 %s37, 1
          %s104 = scalar_lea.sflag [#allocation3], %s103
          %s105 = sand.u32 %s37, 1
          %s106 = smul.addr %s105, 6
          %s107 = scalar_lea.vmem [#allocation2], %s106
          %s109 = ssub.s32 96, 96
          %110 = vsyncadd %s104, %s109
          %s111 = smul.addr %s20, 3
          %s112 = sadd.s32 %s21, %s111
          %s113 = smul.addr %s112, 32
          %s114 = scalar_lea.hbm %s0, %s113
          %s115 = sshll.u32 %s107, 4
          %s116 = int_to_ptr.vmem [resolvable:$true] %s115
          %121 = dma.hbm_to_vmem [thread:$0]  %s114, 96, %s116, %s104, 32, 32, 2
        $region20: #{tpu_custom_call.1} parent=15 // pred_fallthru
          _
      $region16: #{tpu_custom_call.1} parent=5 // pred_fallthru
        _
      %p122 = scmp.le.s32.totalorder 1, %s13
      %p123 = scmp.lt.s32.totalorder %s13, 3
      %p124 = pnand %p122, %p123
      %p125 = pneg %p124
      // Predicated region
      $region21: #{tpu_custom_call.1} parent=5 // pred_check
        _
      $region22: #{tpu_custom_call.1} parent=5 // pred_check_branch
        %127 = sbr.rel (%p124) target = $region24
      $region23: #{tpu_custom_call.1} parent=5 // pred_region
        %s128 = ssub.s32 %s13, 1
        %s129 = sand.u32 %s40, 1
        %s130 = scalar_lea.sflag [#allocation3], %s129
        %s131 = sand.u32 %s40, 1
        %s132 = smul.addr %s131, 6
        %s133 = scalar_lea.vmem [#allocation2], %s132
        // Predicated region
        $region25: #{tpu_custom_call.1} parent=23 // pred_check
          %p134 = pneg %p53
        $region26: #{tpu_custom_call.1} parent=23 // pred_check_branch
          %136 = sbr.rel (%p134) target = $region28
        $region27: #{tpu_custom_call.1} parent=23 // pred_region
          %137 = dma.done %s130, 96
        $region28: #{tpu_custom_call.1} parent=23 // pred_fallthru
          _
        %s138 = sand.u32 %s40, 1
        %s139 = scalar_lea.sflag [#allocation3], %s138
        %s140 = sand.u32 %s40, 1
        %s141 = smul.addr %s140, 6
        %s142 = scalar_lea.vmem [#allocation2], %s141
        %p143 = pneg %p53
        %p144 = pneg %p50
        %p145 = pneg %p81
        %p146 = pneg %p78
        %s147 = sand.u32 %s68, 1
        %s148 = scalar_lea.sflag [#allocation4], %s147
        %s149 = sand.u32 %s68, 1
        %s150 = smul.addr %s149, 6
        %s151 = scalar_lea.vmem [#allocation5], %s150
        %v152 = vld [vmem:[%s133] sm:$0x3]
        %s153 = scalar_lea.vmem %s133, 2 [#allocation2]
        %v154 = vld [vmem:[%s153] sm:$0x3]
        %s155 = scalar_lea.vmem %s133, 4 [#allocation2]
        %v156 = vld [vmem:[%s155] sm:$0x3]
        %v157 = vmax.f32 %v152, %v154
        %v158 = vmax.f32 %v157, %v156
        %v159 = vmin.f32 %v152, %v154
        %v160 = vmin.f32 %v159, %v156
        %v161 = vsub.f32 %v158, %v160
        %v162 = vadd.f32 %v161, 1e-10
        %v163 = vrcp.pop %v162
        %v164 = vmul.f32 %v162, %v163
        %v165 = vsub.f32 2.0, %v164
        %v166 = vmul.f32 %v163, %v165
        %v167 = vmul.f32 %v166, 0.16666667
        %v168 = vsub.f32 %v154, %v152
        %v169 = vmul.f32 %v168, %v167
        %v170 = vadd.f32 %v169, 0.16666667
        %v171 = vsub.f32 %v156, %v154
        %v172 = vmul.f32 %v171, %v167
        %v173 = vadd.f32 %v172, 0.5
        %v174 = vsub.f32 %v152, %v156
        %v175 = vmul.f32 %v174, %v167
        %v176 = vadd.f32 %v175, 0.8333333
        %vm177 = vcmp.le.f32.partialorder %v152, %v154
        %vm178 = vcmp.le.f32.partialorder %v152, %v156
        %vm179 = vmand %vm177, %vm178
        %vm180 = vcmp.lt.f32.partialorder %v154, %v152
        %vm181 = vcmp.le.f32.partialorder %v154, %v156
        %vm182 = vmand %vm180, %vm181
        %v183 = vsel %vm182, %v176, %v170
        %v184 = vsel %vm179, %v173, %v183
        %v185 = vadd.f32 %v158, 1e-10
        %v186 = vrcp.pop %v185
        %v187 = vmul.f32 %v185, %v186
        %v188 = vsub.f32 2.0, %v187
        %v189 = vmul.f32 %v186, %v188
        %v190 = vmul.f32 %v162, %v189
        %191 = vst [vmem:[%s151] sm:$0x3] %v184
        %s192 = scalar_lea.vmem %s151, 2 [#allocation5]
        %193 = vst [vmem:[%s192] sm:$0x3] %v190
        %s194 = scalar_lea.vmem %s151, 4 [#allocation5]
        %195 = vst [vmem:[%s194] sm:$0x3] %v158
        %s196 = sand.u32 %s68, 1
        %s197 = scalar_lea.sflag [#allocation4], %s196
        %s198 = sand.u32 %s68, 1
        %s199 = smul.addr %s198, 6
        %s200 = scalar_lea.vmem [#allocation5], %s199
        // Predicated region
        $region29: #{tpu_custom_call.1} parent=23 // pred_check
          %p201 = pneg %p78
        $region30: #{tpu_custom_call.1} parent=23 // pred_check_branch
          %203 = sbr.rel (%p201) target = $region32
        $region31: #{tpu_custom_call.1} parent=23 // pred_region
          %s205 = ssub.s32 96, 96
          %206 = vsyncadd %s197, %s205
          %s207 = smul.addr %s22, 3
          %s208 = sadd.s32 %s23, %s207
          %s209 = smul.addr %s208, 32
          %s210 = scalar_lea.hbm %s1, %s209
          %s211 = sshll.u32 %s200, 4
          %s212 = int_to_ptr.vmem [resolvable:$true] %s211
          %217 = dma.vmem_to_hbm [thread:$0]  %s212, 96, %s210, %s197, 32, 32, 2
        $region32: #{tpu_custom_call.1} parent=23 // pred_fallthru
          _
      $region24: #{tpu_custom_call.1} parent=5 // pred_fallthru
        _
      %p218 = scmp.le.s32.totalorder 2, %s13
      // Predicated region
      $region33: #{tpu_custom_call.1} parent=5 // pred_check
        %p219 = pneg %p218
      $region34: #{tpu_custom_call.1} parent=5 // pred_check_branch
        %221 = sbr.rel (%p219) target = $region36
      $region35: #{tpu_custom_call.1} parent=5 // pred_region
        %s222 = ssub.s32 %s13, 2
        // Predicated region
        $region37: #{tpu_custom_call.1} parent=35 // pred_check
          %p223 = pneg %p84
        $region38: #{tpu_custom_call.1} parent=35 // pred_check_branch
          %225 = sbr.rel (%p223) target = $region40
        $region39: #{tpu_custom_call.1} parent=35 // pred_region
          %s226 = sand.u32 %s69, 1
          %s227 = scalar_lea.sflag [#allocation4], %s226
          %s228 = sand.u32 %s69, 1
          %s229 = smul.addr %s228, 6
          %s230 = scalar_lea.vmem [#allocation5], %s229
          %231 = dma.done %s227, 96
        $region40: #{tpu_custom_call.1} parent=35 // pred_fallthru
          _
      $region36: #{tpu_custom_call.1} parent=5 // pred_fallthru
        _
    $region6: #{tpu_custom_call.1} parent=1 // loop_footer
      %s17 = sadd.s32 1, %s13
    $region7: #{tpu_custom_call.1} parent=1 // loop_footer_branch
      %12 = sbr.rel target = $region3
    $region8: #{tpu_custom_call.1} parent=1 // loop_exit
      _
    %232 = vsyncpa [#allocation3], 1
    %s233 = scalar_lea.sflag [#allocation3], 1
    %234 = vsyncpa %s233, 1
    %235 = vsyncpa [#allocation4], 1
    %s236 = scalar_lea.sflag [#allocation4], 1
    %237 = vsyncpa %s236, 1

</llo_original>
